<compile_context>
chip_gen: v5e
topology: v5e:2x2
jax: 0.10.0
libtpu: 0.0.40
codegen_flags: <defaults>
</compile_context>

<pallas_src>
import functools

import jax
import jax.numpy as jnp
from jax.experimental import pallas as pl
from jax.experimental.pallas import tpu as pltpu

_LN_EPS = 1e-5


# ------------------------------ fused kernel -------------------------------

def _mlp_stage_kernel(x_ref, w_ref, aux_ref, wf_ref, bf_ref, o_ref, act_ref,
                      *, valid_width, eps):
    """One (group, layer) grid step of an MLP "stage".

    A stage = L x [Linear -> LayerNorm -> ReLU] followed by a final Linear,
    applied independently for each of G groups (heads; the backbone is G=1).
    Grid = (G, L). The activation is carried across the layer axis in a VMEM
    scratch; the final Linear is fused into the last layer step of each group.

      x_ref  : (B, P)      f32   stage input (same block every step)
      w_ref  : (P, P)      bf16  layer s of group g, pre-transposed (Din, Dout)
      aux_ref: (3, P)      f32   rows = [bias, gamma, beta] of layer s
      wf_ref : (P, P_out)  bf16  final Linear of group g
      bf_ref : (1, P_out)  f32   final bias of group g
      o_ref  : (B, P_out)        output block of group g (written on last step)
      act_ref: (B, P)      f32   activation carried across the layer axis
    """
    s = pl.program_id(1)

    @pl.when(s == 0)
    def _():                                    # (re)load the stage input
        act_ref[...] = x_ref[...]

    h = act_ref[...]
    w = w_ref[...]
    y = jnp.dot(h.astype(w.dtype), w, preferred_element_type=jnp.float32)
    y = y + aux_ref[0:1, :]                     # bias

    # LayerNorm over the valid `valid_width` features. Padded lanes of y are
    # exactly 0 (zero-padded weight columns / bias), so full-lane sums equal
    # the masked sums; gamma/beta are zero-padded so padded lanes stay 0.
    inv_n = 1.0 / float(valid_width)
    mean = jnp.sum(y, axis=-1, keepdims=True) * inv_n
    var = jnp.sum(y * y, axis=-1, keepdims=True) * inv_n - mean * mean
    var = jnp.maximum(var, 0.0)
    y = (y - mean) * jax.lax.rsqrt(var + eps)
    y = y * aux_ref[1:2, :] + aux_ref[2:3, :]
    a = jnp.maximum(y, 0.0)                     # ReLU
    act_ref[...] = a

    @pl.when(s == pl.num_programs(1) - 1)
    def _():                                    # fused final Linear of group g
        wf = wf_ref[...]
        out = jnp.dot(a.astype(wf.dtype), wf,
                      preferred_element_type=jnp.float32)
        o_ref[...] = (out + bf_ref[...]).astype(o_ref.dtype)


def _vmem_limit_bytes(B, P, P_out, w_itemsize):
    """Explicit scoped-VMEM limit: double-buffered per-step blocks + residents."""
    per_step = (P * P + P * P_out) * w_itemsize + (3 * P + P_out) * 4
    resident = (2 * B * P + B * P_out) * 4          # x block, act scratch, out
    need = 2 * per_step + resident + (1 << 20)
    return int(min(max(2 * need, 32 << 20), 56 << 20))


def _mlp_stage_call(x, w, aux, wf, bf, *, valid_width, parallel_groups):
    """Run one MLP stage for all G groups.  w/aux are flattened (G*L, ...)."""
    B, P = x.shape
    G = wf.shape[0]
    P_out = wf.shape[-1]
    L = w.shape[0] // G
    kernel = functools.partial(_mlp_stage_kernel, valid_width=valid_width,
                               eps=_LN_EPS)
    vmem_limit = _vmem_limit_bytes(B, P, P_out, jnp.dtype(w.dtype).itemsize)
    return pl.pallas_call(
        kernel,
        out_shape=jax.ShapeDtypeStruct((G * B, P_out), jnp.float32),
        grid=(G, L),
        in_specs=[
            pl.BlockSpec((B, P), lambda g, s: (0, 0)),
            pl.BlockSpec((None, P, P), lambda g, s, L=L: (g * L + s, 0, 0)),
            pl.BlockSpec((None, 3, P), lambda g, s, L=L: (g * L + s, 0, 0)),
            pl.BlockSpec((None, P, P_out), lambda g, s: (g, 0, 0)),
            pl.BlockSpec((None, 1, P_out), lambda g, s: (g, 0, 0)),
        ],
        # Each group writes its (B, P_out) block straight into the stacked out.
        out_specs=pl.BlockSpec((B, P_out), lambda g, s: (g, 0)),
        scratch_shapes=[pltpu.VMEM((B, P), jnp.float32)],
        compiler_params=pltpu.CompilerParams(
            dimension_semantics=(
                ("parallel" if parallel_groups else "arbitrary"), "arbitrary"),
            vmem_limit_bytes=vmem_limit),
    )(x, w, aux, wf, bf)


# ----------------------------- parameter setup -----------------------------

def _init_linear(key, in_f, out_f):
    kw, kb = jax.random.split(key)
    scale = 1.0 / jnp.sqrt(jnp.float32(in_f))
    w = jax.random.uniform(kw, (out_f, in_f), jnp.float32, -scale, scale)
    b = jax.random.uniform(kb, (out_f,), jnp.float32, -scale, scale)
    return {"w": w, "b": b}


def _init_linear_block(key, in_f, out_f):
    p = _init_linear(key, in_f, out_f)
    p["gamma"] = jnp.ones((out_f,), jnp.float32)
    p["beta"] = jnp.zeros((out_f,), jnp.float32)
    return p


def init_mlp(key, input_size, output_size, width, depth):
    """MLP: depth LinearBlocks (Linear+LN+ReLU) then a final Linear."""
    keys = jax.random.split(key, depth + 1)
    params = {"blocks": [], "final": None}
    params["blocks"].append(_init_linear_block(keys[0], input_size, width))
    for i in range(depth - 1):
        params["blocks"].append(_init_linear_block(keys[1 + i], width, width))
    params["final"] = _init_linear(keys[depth], width, output_size)
    return params


def init_multihead_mlp(key, input_size, output_size, width, depth,
                       head_depth, num_heads):
    kb, kh = jax.random.split(key)
    backbone = init_mlp(kb, input_size, width, width, depth)
    head_keys = jax.random.split(kh, num_heads)
    heads = [init_mlp(head_keys[h], width, output_size, width, head_depth)
             for h in range(num_heads)]
    return {"backbone": backbone, "heads": heads}


# -------------------- one-time host-side weight preparation -----------------

def _round_up(x, m):
    return (x + m - 1) // m * m


def _pad_to(a, shape):
    return jnp.pad(a, [(0, s - d) for d, s in zip(a.shape, shape)])


def prepare_params(params, weight_dtype=jnp.bfloat16):
    """Transpose weights to (Din, Dout), zero-pad features to 128-lane widths,
    cast matmul weights to `weight_dtype` (bf16 by default), pack per-layer
    bias/gamma/beta into one (3, P) slab and flatten (group, layer)."""
    backbone, heads = params["backbone"], params["heads"]
    input_size = backbone["blocks"][0]["w"].shape[1]
    width = backbone["blocks"][0]["w"].shape[0]
    output_size = heads[0]["final"]["w"].shape[0]
    num_heads = len(heads)
    P = _round_up(max(input_size, width), 128)
    P_out = _round_up(output_size, 128)

    def stack_stage(mlps, p_out_pad):
        w, aux, wf, bf = [], [], [], []
        for m in mlps:
            for blk in m["blocks"]:
                w.append(_pad_to(blk["w"].T, (P, P)).astype(weight_dtype))
                aux.append(jnp.stack([_pad_to(blk["b"], (P,)),
                                      _pad_to(blk["gamma"], (P,)),
                                      _pad_to(blk["beta"], (P,))]))
            wf.append(_pad_to(m["final"]["w"].T,
                              (P, p_out_pad)).astype(weight_dtype))
            bf.append(_pad_to(m["final"]["b"][None, :], (1, p_out_pad)))
        return (jnp.stack(w), jnp.stack(aux), jnp.stack(wf), jnp.stack(bf))

    return {
        "P": P, "P_out": P_out, "width": width, "output_size": output_size,
        "num_heads": num_heads,
        "backbone": stack_stage([backbone], P),      # backbone final: P -> P
        "heads": stack_stage(heads, P_out),          # head final: P -> P_out
    }


# ------------------------------- forward pass -------------------------------

def multihead_mlp_forward(prepared, x):
    P, P_out = prepared["P"], prepared["P_out"]
    width, output_size = prepared["width"], prepared["output_size"]
    num_heads = prepared["num_heads"]

    B0 = x.shape[0]
    # bf16 matmul inputs pack (16, 128) per sublane tile -> round batch to 16.
    # Padded batch rows flow through LN as finite junk (var ~ 0, scaled by
    # rsqrt(eps)); they never mix into valid rows and are trimmed below.
    B = _round_up(B0, 16)
    x_p = _pad_to(x.astype(jnp.float32), (B, P))

    hid = _mlp_stage_call(x_p, *prepared["backbone"], valid_width=width,
                          parallel_groups=False)                  # (B, P)
    out = _mlp_stage_call(hid, *prepared["heads"], valid_width=width,
                          parallel_groups=True)                   # (H*B, P_out)

    out = out.reshape(num_heads, B, P_out)[:, :B0, :output_size]
    return out.reshape(num_heads * B0, output_size)


# ---------------------------- pure-JAX reference ----------------------------

def _ref_block(x, blk):
    y = x @ blk["w"].T + blk["b"]
    mean = y.mean(-1, keepdims=True)
    var = ((y - mean) ** 2).mean(-1, keepdims=True)
    y = (y - mean) / jnp.sqrt(var + _LN_EPS) * blk["gamma"] + blk["beta"]
    return jnp.maximum(y, 0.0)


def _ref_mlp(params, x):
    for blk in params["blocks"]:
        x = _ref_block(x, blk)
    return x @ params["final"]["w"].T + params["final"]["b"]


def _ref_forward(params, x):
    x = _ref_mlp(params["backbone"], x)
    return jnp.concatenate([_ref_mlp(h, x) for h in params["heads"]], axis=0)


if __name__ == "__main__":
    # small shapes consistent with the module
    batch, input_size, output_size = 8, 32, 16
    width, depth, head_depth, num_heads = 32, 2, 2, 3

    key = jax.random.PRNGKey(0)
    kp, kx = jax.random.split(key)
    params = init_multihead_mlp(kp, input_size, output_size, width, depth,
                                head_depth, num_heads)
    x = jax.random.normal(kx, (batch, input_size), jnp.float32)
    ref = _ref_forward(params, x)

    # Performance configuration: bf16 weights in HBM, f32 LN/accumulator math.
    prepared = prepare_params(params)                     # bf16 weights
    out = jax.block_until_ready(multihead_mlp_forward(prepared, x))
    assert out.shape == (num_heads * batch, output_size), out.shape
    assert jnp.allclose(out, ref, atol=5e-2, rtol=5e-2), float(
        jnp.max(jnp.abs(out - ref)))

    # Exactness check of the same kernels with f32 weights.
    prepared32 = prepare_params(params, weight_dtype=jnp.float32)
    out32 = jax.block_until_ready(multihead_mlp_forward(prepared32, x))
    assert jnp.allclose(out32, ref, atol=5e-4, rtol=5e-4), float(
        jnp.max(jnp.abs(out32 - ref)))

    print("KERNEL_OK")
</pallas_src>

<mosaic_0001>
module attributes {stable_mosaic.version = 11 : i64} {
  func.func @_mlp_stage_kernel(%arg0: i32, %arg1: i32, %arg2: memref<16x128xf32, #tpu.memory_space<vmem>>, %arg3: memref<1x128x128xbf16, #tpu.memory_space<vmem>>, %arg4: memref<1x3x128xf32, #tpu.memory_space<vmem>>, %arg5: memref<1x128x128xbf16, #tpu.memory_space<vmem>>, %arg6: memref<1x1x128xf32, #tpu.memory_space<vmem>>, %arg7: memref<16x128xf32, #tpu.memory_space<vmem>>, %arg8: memref<16x128xf32, #tpu.memory_space<vmem>>) attributes {dimension_semantics = [#tpu.dimension_semantics<arbitrary>, #tpu.dimension_semantics<arbitrary>], iteration_bounds = array<i64: 1, 2>, scalar_prefetch = 0 : i64, scratch_operands = 1 : i64, tpu.core_type = #tpu.core_type<tc>, window_params = [{pipeline_mode = #tpu.pipeline_mode<synchronous>, transform_indices = @transform_0, window_bounds = array<i64: 16, 128>}, {transform_indices = @transform_1, window_bounds = array<i64: 1, 128, 128>}, {transform_indices = @transform_2, window_bounds = array<i64: 1, 3, 128>}, {transform_indices = @transform_3, window_bounds = array<i64: 1, 128, 128>}, {transform_indices = @transform_4, window_bounds = array<i64: 1, 1, 128>}, {transform_indices = @transform_5, window_bounds = array<i64: 16, 128>}]} {
    %c0_i32 = arith.constant 0 : i32
    %0 = arith.cmpi eq, %arg1, %c0_i32 : i32
    %1 = arith.extui %0 : i1 to i32
    %c0_i32_0 = arith.constant 0 : i32
    %2 = arith.cmpi ne, %1, %c0_i32_0 : i32
    scf.if %2 {
      %c0_22 = arith.constant 0 : index
      %c0_23 = arith.constant 0 : index
      %46 = vector.load %arg2[%c0_22, %c0_23] : memref<16x128xf32, #tpu.memory_space<vmem>>, vector<16x128xf32>
      %c0_24 = arith.constant 0 : index
      %c0_25 = arith.constant 0 : index
      %47 = vector.load %arg8[%c0_24, %c0_25] : memref<16x128xf32, #tpu.memory_space<vmem>>, vector<16x128xf32>
      tpu.vector_store %arg8[%c0_24, %c0_25], %46 {strides = array<i32>} : memref<16x128xf32, #tpu.memory_space<vmem>>, vector<16x128xf32>,
    } else {
    }
    %c0 = arith.constant 0 : index
    %c0_1 = arith.constant 0 : index
    %3 = vector.load %arg8[%c0, %c0_1] : memref<16x128xf32, #tpu.memory_space<vmem>>, vector<16x128xf32>
    %c0_2 = arith.constant 0 : index
    %c0_3 = arith.constant 0 : index
    %c0_4 = arith.constant 0 : index
    %4 = vector.load %arg3[%c0_2, %c0_3, %c0_4] : memref<1x128x128xbf16, #tpu.memory_space<vmem>>, vector<1x128x128xbf16>
    %5 = vector.shape_cast %4 : vector<1x128x128xbf16> to vector<128x128xbf16>
    %6 = arith.truncf %3 : vector<16x128xf32> to vector<16x128xbf16>
    %cst = arith.constant dense<0.000000e+00> : vector<16x128xf32>
    %7 = tpu.matmul %6, %5, %cst {dimension_numbers = #tpu.dot_dimension_numbers<[1], [0], [0], [1], [0, 0, 1, 1], [], []>} : vector<16x128xbf16>, vector<128x128xbf16>, vector<16x128xf32> -> vector<16x128xf32>
    %c0_5 = arith.constant 0 : index
    %c0_6 = arith.constant 0 : index
    %c0_7 = arith.constant 0 : index
    %8 = vector.load %arg4[%c0_5, %c0_6, %c0_7] : memref<1x3x128xf32, #tpu.memory_space<vmem>>, vector<1x1x128xf32>
    %9 = vector.shape_cast %8 : vector<1x1x128xf32> to vector<1x128xf32>
    %10 = vector.broadcast %9 : vector<1x128xf32> to vector<16x128xf32>
    %11 = arith.addf %7, %10 : vector<16x128xf32>
    %cst_8 = arith.constant dense<0.000000e+00> : vector<16xf32>
    %12 = vector.multi_reduction <add>, %11, %cst_8 [1] : vector<16x128xf32> to vector<16xf32>
    %13 = vector.shape_cast %12 : vector<16xf32> to vector<16x1xf32>
    %cst_9 = arith.constant 3.125000e-02 : f32
    %14 = vector.broadcast %cst_9 : f32 to vector<16x1xf32>
    %15 = arith.mulf %13, %14 : vector<16x1xf32>
    %16 = arith.mulf %11, %11 : vector<16x128xf32>
    %cst_10 = arith.constant dense<0.000000e+00> : vector<16xf32>
    %17 = vector.multi_reduction <add>, %16, %cst_10 [1] : vector<16x128xf32> to vector<16xf32>
    %18 = vector.shape_cast %17 : vector<16xf32> to vector<16x1xf32>
    %cst_11 = arith.constant 3.125000e-02 : f32
    %19 = vector.broadcast %cst_11 : f32 to vector<16x1xf32>
    %20 = arith.mulf %18, %19 : vector<16x1xf32>
    %21 = arith.mulf %15, %15 : vector<16x1xf32>
    %22 = arith.subf %20, %21 : vector<16x1xf32>
    %cst_12 = arith.constant 0.000000e+00 : f32
    %23 = vector.broadcast %cst_12 : f32 to vector<16x1xf32>
    %24 = arith.maximumf %22, %23 : vector<16x1xf32>
    %25 = vector.broadcast %15 : vector<16x1xf32> to vector<16x128xf32>
    %26 = arith.subf %11, %25 : vector<16x128xf32>
    %cst_13 = arith.constant 9.99999974E-6 : f32
    %27 = vector.broadcast %cst_13 : f32 to vector<16x1xf32>
    %28 = arith.addf %24, %27 : vector<16x1xf32>
    %29 = math.rsqrt %28 : vector<16x1xf32>
    %30 = vector.broadcast %29 : vector<16x1xf32> to vector<16x128xf32>
    %31 = arith.mulf %26, %30 : vector<16x128xf32>
    %c0_14 = arith.constant 0 : index
    %c1 = arith.constant 1 : index
    %c0_15 = arith.constant 0 : index
    %32 = vector.load %arg4[%c0_14, %c1, %c0_15] : memref<1x3x128xf32, #tpu.memory_space<vmem>>, vector<1x1x128xf32>
    %33 = vector.shape_cast %32 : vector<1x1x128xf32> to vector<1x128xf32>
    %34 = vector.broadcast %33 : vector<1x128xf32> to vector<16x128xf32>
    %35 = arith.mulf %31, %34 : vector<16x128xf32>
    %c0_16 = arith.constant 0 : index
    %c2 = arith.constant 2 : index
    %c0_17 = arith.constant 0 : index
    %36 = vector.load %arg4[%c0_16, %c2, %c0_17] : memref<1x3x128xf32, #tpu.memory_space<vmem>>, vector<1x1x128xf32>
    %37 = vector.shape_cast %36 : vector<1x1x128xf32> to vector<1x128xf32>
    %38 = vector.broadcast %37 : vector<1x128xf32> to vector<16x128xf32>
    %39 = arith.addf %35, %38 : vector<16x128xf32>
    %cst_18 = arith.constant 0.000000e+00 : f32
    %40 = vector.broadcast %cst_18 : f32 to vector<16x128xf32>
    %41 = arith.maximumf %39, %40 : vector<16x128xf32>
    %c0_19 = arith.constant 0 : index
    %c0_20 = arith.constant 0 : index
    %42 = vector.load %arg8[%c0_19, %c0_20] : memref<16x128xf32, #tpu.memory_space<vmem>>, vector<16x128xf32>
    tpu.vector_store %arg8[%c0_19, %c0_20], %41 {strides = array<i32>} : memref<16x128xf32, #tpu.memory_space<vmem>>, vector<16x128xf32>,
    %c1_i32 = arith.constant 1 : i32
    %43 = arith.cmpi eq, %arg1, %c1_i32 : i32
    %44 = arith.extui %43 : i1 to i32
    %c0_i32_21 = arith.constant 0 : i32
    %45 = arith.cmpi ne, %44, %c0_i32_21 : i32
    scf.if %45 {
      %c0_22 = arith.constant 0 : index
      %c0_23 = arith.constant 0 : index
      %c0_24 = arith.constant 0 : index
      %46 = vector.load %arg5[%c0_22, %c0_23, %c0_24] : memref<1x128x128xbf16, #tpu.memory_space<vmem>>, vector<1x128x128xbf16>
      %47 = vector.shape_cast %46 : vector<1x128x128xbf16> to vector<128x128xbf16>
      %48 = arith.truncf %41 : vector<16x128xf32> to vector<16x128xbf16>
      %cst_25 = arith.constant dense<0.000000e+00> : vector<16x128xf32>
      %49 = tpu.matmul %48, %47, %cst_25 {dimension_numbers = #tpu.dot_dimension_numbers<[1], [0], [0], [1], [0, 0, 1, 1], [], []>} : vector<16x128xbf16>, vector<128x128xbf16>, vector<16x128xf32> -> vector<16x128xf32>
      %c0_26 = arith.constant 0 : index
      %c0_27 = arith.constant 0 : index
      %c0_28 = arith.constant 0 : index
      %50 = vector.load %arg6[%c0_26, %c0_27, %c0_28] : memref<1x1x128xf32, #tpu.memory_space<vmem>>, vector<1x1x128xf32>
      %51 = vector.shape_cast %50 : vector<1x1x128xf32> to vector<1x128xf32>
      %52 = vector.broadcast %51 : vector<1x128xf32> to vector<16x128xf32>
      %53 = arith.addf %49, %52 : vector<16x128xf32>
      %c0_29 = arith.constant 0 : index
      %c0_30 = arith.constant 0 : index
      %54 = vector.load %arg7[%c0_29, %c0_30] : memref<16x128xf32, #tpu.memory_space<vmem>>, vector<16x128xf32>
      tpu.vector_store %arg7[%c0_29, %c0_30], %53 {strides = array<i32>} : memref<16x128xf32, #tpu.memory_space<vmem>>, vector<16x128xf32>,
    } else {
    }
    return
  }
  func.func @transform_0(%arg0: i32, %arg1: i32) -> (i32, i32) {
    %c0_i32 = arith.constant 0 : i32
    %c0_i32_0 = arith.constant 0 : i32
    %c0_i32_1 = arith.constant 0 : i32
    return %c0_i32, %c0_i32_0 : i32, i32
  }
  func.func @transform_1(%arg0: i32, %arg1: i32) -> (i32, i32, i32) {
    %c2_i32 = arith.constant 2 : i32
    %0 = arith.muli %arg0, %c2_i32 : i32
    %1 = arith.addi %0, %arg1 : i32
    %c0_i32 = arith.constant 0 : i32
    %c0_i32_0 = arith.constant 0 : i32
    %c0_i32_1 = arith.constant 0 : i32
    return %1, %c0_i32, %c0_i32_0 : i32, i32, i32
  }
  func.func @transform_2(%arg0: i32, %arg1: i32) -> (i32, i32, i32) {
    %c2_i32 = arith.constant 2 : i32
    %0 = arith.muli %arg0, %c2_i32 : i32
    %1 = arith.addi %0, %arg1 : i32
    %c0_i32 = arith.constant 0 : i32
    %c0_i32_0 = arith.constant 0 : i32
    %c0_i32_1 = arith.constant 0 : i32
    return %1, %c0_i32, %c0_i32_0 : i32, i32, i32
  }
  func.func @transform_3(%arg0: i32, %arg1: i32) -> (i32, i32, i32) {
    %c0_i32 = arith.constant 0 : i32
    %c0_i32_0 = arith.constant 0 : i32
    %c0_i32_1 = arith.constant 0 : i32
    return %arg0, %c0_i32, %c0_i32_0 : i32, i32, i32
  }
  func.func @transform_4(%arg0: i32, %arg1: i32) -> (i32, i32, i32) {
    %c0_i32 = arith.constant 0 : i32
    %c0_i32_0 = arith.constant 0 : i32
    %c0_i32_1 = arith.constant 0 : i32
    return %arg0, %c0_i32, %c0_i32_0 : i32, i32, i32
  }
  func.func @transform_5(%arg0: i32, %arg1: i32) -> (i32, i32) {
    %c0_i32 = arith.constant 0 : i32
    %c0_i32_0 = arith.constant 0 : i32
    return %arg0, %c0_i32 : i32, i32
  }
}

</mosaic_0001>

<llo_original>
// kernel: tpu_custom_call.1
$region0: #{tpu_custom_call.1}
  #allocation0 [shape = 'u32[]', space=smem, size = 0x4, offset = 0x4, fixed_abs, tag = 'smem constant byte address 0x4 - core index']
  #allocation1 [shape = 'u32[72,128]{1,0:T(1,128)}', space=vmem, size = 0x9000, scoped, tag = 'internal scratch']
  #allocation2 [shape = 'f32[16,128]{1,0:T(8,128)}', space=vmem, size = 0x2000, scoped, tag = 'scratch operand']
  %s0 = inlined_call_operand.hbm [shape: f32[16,128], index: 0, kind: input, shape index: {}]
  %s1 = inlined_call_operand.hbm [shape: bf16[2,128,128], index: 1, kind: input, shape index: {}]
  %s2 = inlined_call_operand.vmem [shape: f32[2,3,128], index: 2, kind: input, shape index: {}]
  %s3 = inlined_call_operand.hbm [shape: bf16[1,128,128], index: 3, kind: input, shape index: {}]
  %s4 = inlined_call_operand.vmem [shape: f32[1,1,128], index: 4, kind: input, shape index: {}]
  %s5 = inlined_call_operand.hbm [shape: f32[16,128], index: 5, kind: output, shape index: {}]
  %s6 = sld [smem:[#allocation0]]
  $region73: #{tpu_custom_call.1} parent=0
    _
  %s8 = ssub.s32 1, %s6
  %s9 = scalar_select 0, %s8, %s6
  $region1: #{tpu_custom_call.1} parent=0
    #allocation3 [shape = 'u8[8192]{0}', space=vmem, size = 0x2000, scoped, tag = 'input window, operand 0, single buffered']
    #allocation4 [shape = 's32[2]{0}', space=sflag, size = 0x8, scoped, tag = 'scoped memory for tpu_custom_call.1']
    #allocation5 [shape = 's32[2]{0}', space=sflag, size = 0x8, scoped, tag = 'scoped memory for tpu_custom_call.1']
    #allocation6 [shape = 'u8[65536]{0}', space=vmem, size = 0x10000, scoped, tag = 'input window, operand 1']
    #allocation7 [shape = 's32[2]{0}', space=sflag, size = 0x8, scoped, tag = 'scoped memory for tpu_custom_call.1']
    #allocation8 [shape = 'u8[32768]{0}', space=vmem, size = 0x8000, scoped, tag = 'input window, operand 3, single buffered']
    #allocation9 [shape = 'u8[8192]{0}', space=vmem, size = 0x2000, scoped, tag = 'output window, operand 0, single buffered']
    %10 = vsyncpa [#allocation4], 0
    %11 = vsyncpa [#allocation7], 0
    %s12 = scalar_lea.sflag [#allocation7], 1
    %13 = vsyncpa %s12, 0
    %14 = vsyncpa [#allocation5], 0
    loop: start=0, step=1, limit=4
    $region2: #{tpu_custom_call.1} parent=1 // loop_pre_header
      _
    $region3: #{tpu_custom_call.1} parent=1 // loop_header
      %s16 = sphi 0, %s20
      %p17 = scmp.ge.s32.totalorder %s16, 4
      %s23 = sphi 0, %s35
      %s24 = sphi 0, %s31
      %s25 = sphi 0, %s23
      %s26 = sphi 0, %s24
      %s27 = sphi 0, %s25
      %s28 = sphi 0, %s26
      %s36 = sphi 0, %s36
      %s38 = sphi 0, %s36
      %s39 = sphi 0, %s38
      %s53 = sphi 0, %s39
      %s63 = sphi 0, %s65
      %s66 = sphi 0, %s63
      %s67 = sphi 0, %s66
      %s83 = sphi 0, %s67
      %s93 = sphi 0, %s95
      %s96 = sphi 0, %s93
      %s97 = sphi 0, %s96
      %s113 = sphi 0, %s97
      %s119 = sphi 0, %s121
      %s122 = sphi 0, %s119
      %s123 = sphi 0, %s122
      %s139 = sphi 0, %s123
      %s145 = sphi 0, %s147
      %s148 = sphi 0, %s145
      %s149 = sphi 0, %s148
      %s165 = sphi 0, %s149
      %s171 = sphi 0, %s173
      %s174 = sphi 0, %s171
      %s175 = sphi 0, %s174
      %s191 = sphi 0, %s175
    $region4: #{tpu_custom_call.1} parent=1 // loop_header_branch
      %19 = sbr.rel (%p17) target = $region8
    $region5: #{tpu_custom_call.1} parent=1 // loop_body
      %s21 = ssub.s32 %s16, 1
      %s22 = ssub.s32 %s16, 2
      %s29 = sadd.s32 1, %s24
      %p30 = scmp.ge.s32.totalorder %s29, 2
      %s31 = scalar_select %p30, 0, %s29
      %s32 = sadd.s32 1, %s23
      %s33 = scalar_select %p30, %s32, %s23
      %p34 = scmp.ge.s32.totalorder %s33, 1
      %s35 = scalar_select %p34, 0, %s33
      %s37 = sadd.s32 %s36, 1
      %p40 = scmp.eq.s32.totalorder %s16, 1
      %p41 = scmp.ne.s32.totalorder %s36, %s38
      %p42 = scmp.eq.s32.totalorder %s16, 0
      %p43 = por %p41, %p42
      %p44 = scmp.ne.s32.totalorder %s36, %s38
      %p45 = scmp.eq.s32.totalorder %s21, 1
      %p46 = por %p44, %p45
      %p47 = scmp.ne.s32.totalorder %s38, %s39
      %p48 = scmp.eq.s32.totalorder %s21, 0
      %p49 = por %p47, %p48
      %p50 = scmp.ne.s32.totalorder %s38, %s39
      %p51 = scmp.eq.s32.totalorder %s22, 1
      %p52 = por %p50, %p51
      %p54 = scmp.ne.s32.totalorder %s39, %s53
      %p55 = scmp.eq.s32.totalorder %s22, 0
      %p56 = por %p54, %p55
      %s57 = smul.u32 %s23, 2
      %s58 = sadd.s32 %s57, %s24
      %s59 = smul.u32 %s35, 2
      %s60 = sadd.s32 %s59, %s31
      %s61 = ssub.s32 %s58, %s60
      %p62 = scmp.eq.s32.totalorder %s61, 0
      %s64 = sadd.s32 %s63, 1
      %s65 = scalar_select %p62, %s63, %s64
      %p68 = pneg %p62
      %p69 = scmp.eq.s32.totalorder %s16, 1
      %p70 = por %p68, %p69
      %p71 = scmp.ne.s32.totalorder %s63, %s66
      %p72 = scmp.eq.s32.totalorder %s16, 0
      %p73 = por %p71, %p72
      %p74 = scmp.ne.s32.totalorder %s63, %s66
      %p75 = scmp.eq.s32.totalorder %s21, 1
      %p76 = por %p74, %p75
      %p77 = scmp.ne.s32.totalorder %s66, %s67
      %p78 = scmp.eq.s32.totalorder %s21, 0
      %p79 = por %p77, %p78
      %p80 = scmp.ne.s32.totalorder %s66, %s67
      %p81 = scmp.eq.s32.totalorder %s22, 1
      %p82 = por %p80, %p81
      %p84 = scmp.ne.s32.totalorder %s67, %s83
      %p85 = scmp.eq.s32.totalorder %s22, 0
      %p86 = por %p84, %p85
      %s87 = smul.u32 %s23, 2
      %s88 = sadd.s32 %s87, %s24
      %s89 = smul.u32 %s35, 2
      %s90 = sadd.s32 %s89, %s31
      %s91 = ssub.s32 %s88, %s90
      %p92 = scmp.eq.s32.totalorder %s91, 0
      %s94 = sadd.s32 %s93, 1
      %s95 = scalar_select %p92, %s93, %s94
      %p98 = pneg %p92
      %p99 = scmp.eq.s32.totalorder %s16, 1
      %p100 = por %p98, %p99
      %p101 = scmp.ne.s32.totalorder %s93, %s96
      %p102 = scmp.eq.s32.totalorder %s16, 0
      %p103 = por %p101, %p102
      %p104 = scmp.ne.s32.totalorder %s93, %s96
      %p105 = scmp.eq.s32.totalorder %s21, 1
      %p106 = por %p104, %p105
      %p107 = scmp.ne.s32.totalorder %s96, %s97
      %p108 = scmp.eq.s32.totalorder %s21, 0
      %p109 = por %p107, %p108
      %p110 = scmp.ne.s32.totalorder %s96, %s97
      %p111 = scmp.eq.s32.totalorder %s22, 1
      %p112 = por %p110, %p111
      %p114 = scmp.ne.s32.totalorder %s97, %s113
      %p115 = scmp.eq.s32.totalorder %s22, 0
      %p116 = por %p114, %p115
      %s117 = ssub.s32 %s23, %s35
      %p118 = scmp.eq.s32.totalorder %s117, 0
      %s120 = sadd.s32 %s119, 1
      %s121 = scalar_select %p118, %s119, %s120
      %p124 = pneg %p118
      %p125 = scmp.eq.s32.totalorder %s16, 1
      %p126 = por %p124, %p125
      %p127 = scmp.ne.s32.totalorder %s119, %s122
      %p128 = scmp.eq.s32.totalorder %s16, 0
      %p129 = por %p127, %p128
      %p130 = scmp.ne.s32.totalorder %s119, %s122
      %p131 = scmp.eq.s32.totalorder %s21, 1
      %p132 = por %p130, %p131
      %p133 = scmp.ne.s32.totalorder %s122, %s123
      %p134 = scmp.eq.s32.totalorder %s21, 0
      %p135 = por %p133, %p134
      %p136 = scmp.ne.s32.totalorder %s122, %s123
      %p137 = scmp.eq.s32.totalorder %s22, 1
      %p138 = por %p136, %p137
      %p140 = scmp.ne.s32.totalorder %s123, %s139
      %p141 = scmp.eq.s32.totalorder %s22, 0
      %p142 = por %p140, %p141
      %s143 = ssub.s32 %s23, %s35
      %p144 = scmp.eq.s32.totalorder %s143, 0
      %s146 = sadd.s32 %s145, 1
      %s147 = scalar_select %p144, %s145, %s146
      %p150 = pneg %p144
      %p151 = scmp.eq.s32.totalorder %s16, 1
      %p152 = por %p150, %p151
      %p153 = scmp.ne.s32.totalorder %s145, %s148
      %p154 = scmp.eq.s32.totalorder %s16, 0
      %p155 = por %p153, %p154
      %p156 = scmp.ne.s32.totalorder %s145, %s148
      %p157 = scmp.eq.s32.totalorder %s21, 1
      %p158 = por %p156, %p157
      %p159 = scmp.ne.s32.totalorder %s148, %s149
      %p160 = scmp.eq.s32.totalorder %s21, 0
      %p161 = por %p159, %p160
      %p162 = scmp.ne.s32.totalorder %s148, %s149
      %p163 = scmp.eq.s32.totalorder %s22, 1
      %p164 = por %p162, %p163
      %p166 = scmp.ne.s32.totalorder %s149, %s165
      %p167 = scmp.eq.s32.totalorder %s22, 0
      %p168 = por %p166, %p167
      %s169 = ssub.s32 %s23, %s35
      %p170 = scmp.eq.s32.totalorder %s169, 0
      %s172 = sadd.s32 %s171, 1
      %s173 = scalar_select %p170, %s171, %s172
      %p176 = pneg %p170
      %p177 = scmp.eq.s32.totalorder %s16, 1
      %p178 = por %p176, %p177
      %p179 = scmp.ne.s32.totalorder %s171, %s174
      %p180 = scmp.eq.s32.totalorder %s16, 0
      %p181 = por %p179, %p180
      %p182 = scmp.ne.s32.totalorder %s171, %s174
      %p183 = scmp.eq.s32.totalorder %s21, 1
      %p184 = por %p182, %p183
      %p185 = scmp.ne.s32.totalorder %s174, %s175
      %p186 = scmp.eq.s32.totalorder %s21, 0
      %p187 = por %p185, %p186
      %p188 = scmp.ne.s32.totalorder %s174, %s175
      %p189 = scmp.eq.s32.totalorder %s22, 1
      %p190 = por %p188, %p189
      %p192 = scmp.ne.s32.totalorder %s175, %s191
      %p193 = scmp.eq.s32.totalorder %s22, 0
      %p194 = por %p192, %p193
      %p195 = scmp.le.s32.totalorder 1, %s16
      %p196 = scmp.lt.s32.totalorder %s16, 3
      %p197 = pnand %p195, %p196
      %p198 = pneg %p197
      // Predicated region
      $region9: #{tpu_custom_call.1} parent=5 // pred_check
        _
      $region10: #{tpu_custom_call.1} parent=5 // pred_check_branch
        %200 = sbr.rel (%p197) target = $region12
      $region11: #{tpu_custom_call.1} parent=5 // pred_region
        %s201 = ssub.s32 %s16, 1
        // Predicated region
        $region13: #{tpu_custom_call.1} parent=11 // pred_check
          %p202 = pneg %p49
        $region14: #{tpu_custom_call.1} parent=11 // pred_check_branch
          %204 = sbr.rel (%p202) target = $region16
        $region15: #{tpu_custom_call.1} parent=11 // pred_region
          %206 = vsyncadd [#allocation4], 0
          %s207 = sshll.u32 %s0, 4
          %s208 = int_to_ptr.hbm [resolvable:$true] %s207
          %s209 = sshll.u32 [#allocation3], 4
          %s210 = int_to_ptr.vmem [resolvable:$true] %s209
          %215 = dma.hbm_to_vmem [thread:$0]  %s208, 256, %s210, [#allocation4], 128, 128, 8
        $region16: #{tpu_custom_call.1} parent=11 // pred_fallthru
          _
        // Predicated region
        $region17: #{tpu_custom_call.1} parent=11 // pred_check
          %p216 = pneg %p135
        $region18: #{tpu_custom_call.1} parent=11 // pred_check_branch
          %218 = sbr.rel (%p216) target = $region20
        $region19: #{tpu_custom_call.1} parent=11 // pred_region
          %220 = vsyncadd [#allocation7], 0
          %s221 = smul.addr %s25, 16
          %s222 = smul.addr %s221, 4
          %s223 = scalar_lea.hbm %s3, %s222
          %s224 = sshll.u32 %s223, 4
          %s225 = int_to_ptr.hbm [resolvable:$true] %s224
          %s226 = sshll.u32 [#allocation8], 4
          %s227 = int_to_ptr.vmem [resolvable:$true] %s226
          %232 = dma.hbm_to_vmem [thread:$0]  %s225, 1024, %s227, [#allocation7], 64, 64, 4
        $region20: #{tpu_custom_call.1} parent=11 // pred_fallthru
          _
        // Predicated region
        $region21: #{tpu_custom_call.1} parent=11 // pred_check
          %p233 = pneg %p161
        $region22: #{tpu_custom_call.1} parent=11 // pred_check_branch
          %235 = sbr.rel (%p233) target = $region24
        $region23: #{tpu_custom_call.1} parent=11 // pred_region
          %p236 = scmp.lt.s32.totalorder %s25, 0
          %s237 = scalar_select %p236, %s25, 0
          %s238 = scalar_lea.vmem %s4, %s237
        $region24: #{tpu_custom_call.1} parent=11 // pred_fallthru
          _
      $region12: #{tpu_custom_call.1} parent=5 // pred_fallthru
        _
      %p239 = scmp.lt.s32.totalorder %s16, 2
      // Predicated region
      $region25: #{tpu_custom_call.1} parent=5 // pred_check
        %p240 = pneg %p239
      $region26: #{tpu_custom_call.1} parent=5 // pred_check_branch
        %242 = sbr.rel (%p240) target = $region28
      $region27: #{tpu_custom_call.1} parent=5 // pred_region
        // Predicated region
        $region29: #{tpu_custom_call.1} parent=27 // pred_check
          %p243 = pneg %p73
        $region30: #{tpu_custom_call.1} parent=27 // pred_check_branch
          %245 = sbr.rel (%p243) target = $region32
        $region31: #{tpu_custom_call.1} parent=27 // pred_region
          %s246 = sand.u32 %s16, 1
          %s247 = scalar_lea.sflag [#allocation7], %s246
          %s248 = sand.u32 %s63, 1
          %s249 = smul.addr %s248, 64
          %s250 = scalar_lea.vmem [#allocation6], %s249
          %s251 = smul.u32 %s23, 2
          %s252 = sadd.s32 %s251, %s24
          %254 = vsyncadd %s247, 0
          %s255 = smul.addr %s252, 16
          %s256 = smul.addr %s255, 4
          %s257 = scalar_lea.hbm %s1, %s256
          %s258 = sshll.u32 %s257, 4
          %s259 = int_to_ptr.hbm [resolvable:$true] %s258
          %s260 = sshll.u32 %s250, 4
          %s261 = int_to_ptr.vmem [resolvable:$true] %s260
          %266 = dma.hbm_to_vmem [thread:$0]  %s259, 1024, %s261, %s247, 64, 64, 4
        $region32: #{tpu_custom_call.1} parent=27 // pred_fallthru
          _
        // Predicated region
        $region33: #{tpu_custom_call.1} parent=27 // pred_check
          %p267 = pneg %p103
        $region34: #{tpu_custom_call.1} parent=27 // pred_check_branch
          %269 = sbr.rel (%p267) target = $region36
        $region35: #{tpu_custom_call.1} parent=27 // pred_region
          %s270 = smul.u32 %s23, 2
          %s271 = sadd.s32 %s270, %s24
          %p272 = scmp.lt.s32.totalorder %s271, 1
          %s273 = scalar_select %p272, %s271, 1
          %s274 = smul.addr %s273, 4
          %s275 = scalar_lea.vmem %s2, %s274
          %s276 = smul.u32 %s23, 2
          %s277 = sadd.s32 %s276, %s24
        $region36: #{tpu_custom_call.1} parent=27 // pred_fallthru
          _
      $region28: #{tpu_custom_call.1} parent=5 // pred_fallthru
        _
      %p278 = scmp.le.s32.totalorder 1, %s16
      %p279 = scmp.lt.s32.totalorder %s16, 3
      %p280 = pnand %p278, %p279
      %p281 = pneg %p280
      // Predicated region
      $region37: #{tpu_custom_call.1} parent=5 // pred_check
        _
      $region38: #{tpu_custom_call.1} parent=5 // pred_check_branch
        %283 = sbr.rel (%p280) target = $region40
      $region39: #{tpu_custom_call.1} parent=5 // pred_region
        %s284 = ssub.s32 %s16, 1
        // Predicated region
        $region41: #{tpu_custom_call.1} parent=39 // pred_check
          %p285 = pneg %p49
        $region42: #{tpu_custom_call.1} parent=39 // pred_check_branch
          %287 = sbr.rel (%p285) target = $region44
        $region43: #{tpu_custom_call.1} parent=39 // pred_region
          %289 = dma.done [#allocation4], 256
        $region44: #{tpu_custom_call.1} parent=39 // pred_fallthru
          _
        %s290 = sand.u32 %s21, 1
        %s291 = scalar_lea.sflag [#allocation7], %s290
        %s292 = sand.u32 %s66, 1
        %s293 = smul.addr %s292, 64
        %s294 = scalar_lea.vmem [#allocation6], %s293
        // Predicated region
        $region45: #{tpu_custom_call.1} parent=39 // pred_check
          %p295 = pneg %p79
        $region46: #{tpu_custom_call.1} parent=39 // pred_check_branch
          %297 = sbr.rel (%p295) target = $region48
        $region47: #{tpu_custom_call.1} parent=39 // pred_region
          %299 = dma.done %s291, 1024
        $region48: #{tpu_custom_call.1} parent=39 // pred_fallthru
          _
        // Predicated region
        $region49: #{tpu_custom_call.1} parent=39 // pred_check
          %p300 = pneg %p135
        $region50: #{tpu_custom_call.1} parent=39 // pred_check_branch
          %302 = sbr.rel (%p300) target = $region52
        $region51: #{tpu_custom_call.1} parent=39 // pred_region
          %304 = dma.done [#allocation7], 1024
        $region52: #{tpu_custom_call.1} parent=39 // pred_fallthru
          _
        %p305 = pneg %p49
        %p306 = pneg %p46
        %s307 = sand.u32 %s21, 1
        %s308 = scalar_lea.sflag [#allocation7], %s307
        %s309 = sand.u32 %s66, 1
        %s310 = smul.addr %s309, 64
        %s311 = scalar_lea.vmem [#allocation6], %s310
        %p312 = pneg %p79
        %p313 = pneg %p76
        %s314 = smul.u32 %s25, 2
        %s315 = sadd.s32 %s314, %s26
        %p316 = scmp.lt.s32.totalorder %s315, 1
        %s317 = scalar_select %p316, %s315, 1
        %s318 = smul.addr %s317, 4
        %s319 = scalar_lea.vmem %s2, %s318
        %p320 = pneg %p109
        %p321 = pneg %p106
        %p322 = pneg %p135
        %p323 = pneg %p132
        %p324 = scmp.lt.s32.totalorder %s25, 0
        %s325 = scalar_select %p324, %s25, 0
        %s326 = scalar_lea.vmem %s4, %s325
        %p327 = pneg %p161
        %p328 = pneg %p158
        %p329 = pneg %p187
        %p330 = pneg %p184
        %s331 = smul.u32 %s25, 2
        %s332 = sadd.s32 %s331, %s26
        %s333 = smul.u32 %s25, 2
        %s334 = sadd.s32 %s333, %s26
        %p335 = scmp.lt.s32.totalorder %s334, 1
        %s336 = scalar_select %p335, %s334, 1
        %s337 = smul.addr %s336, 4
        %s338 = scalar_lea.vmem %s2, %s337
        %s339 = smul.u32 %s25, 2
        %s340 = sadd.s32 %s339, %s26
        %p341 = scmp.lt.s32.totalorder %s25, 0
        %s342 = scalar_select %p341, %s25, 0
        %s343 = scalar_lea.vmem %s4, %s342
        %s344 = smul.u32 2, %s25
        %p345 = scmp.eq.s32.totalorder %s26, 0
        // Predicated region
        $region53: #{tpu_custom_call.1} parent=39 // pred_check
          %p346 = pneg %p345
        $region54: #{tpu_custom_call.1} parent=39 // pred_check_branch
          %348 = sbr.rel (%p346) target = $region56
        $region55: #{tpu_custom_call.1} parent=39 // pred_region
          %v349 = vld [vmem:[#allocation3] sm:$0xff]
          %v350 = vld [vmem:[#allocation3 + $0x8] sm:$0xff]
          %351 = vst [vmem:[#allocation2] sm:$0xff] %v349
          %352 = vst [vmem:[#allocation2 + $0x8] sm:$0xff] %v350
        $region56: #{tpu_custom_call.1} parent=39 // pred_fallthru
          _
        %v353 = vld [vmem:[#allocation2] sm:$0xff]
        %v354 = vld [vmem:[#allocation2 + $0x8] sm:$0xff]
        %v355 = vld [vmem:[%s294] sm:$0xf]
        %v356 = vld [vmem:[%s294 + $0x4] sm:$0xf]
        %v357 = vld [vmem:[%s294 + $0x8] sm:$0xf]
        %v358 = vld [vmem:[%s294 + $0xc] sm:$0xf]
        %v359 = vld [vmem:[%s294 + $0x10] sm:$0xf]
        %v360 = vld [vmem:[%s294 + $0x14] sm:$0xf]
        %v361 = vld [vmem:[%s294 + $0x18] sm:$0xf]
        %v362 = vld [vmem:[%s294 + $0x1c] sm:$0xf]
        %v363 = vld [vmem:[%s294 + $0x20] sm:$0xf]
        %v364 = vld [vmem:[%s294 + $0x24] sm:$0xf]
        %v365 = vld [vmem:[%s294 + $0x28] sm:$0xf]
        %v366 = vld [vmem:[%s294 + $0x2c] sm:$0xf]
        %v367 = vld [vmem:[%s294 + $0x30] sm:$0xf]
        %v368 = vld [vmem:[%s294 + $0x34] sm:$0xf]
        %v369 = vld [vmem:[%s294 + $0x38] sm:$0xf]
        %v370 = vld [vmem:[%s294 + $0x3c] sm:$0xf]
        %v371 = vpack.c.bf16 %v354, %v353
        %v372 = vld [vmem:[%s338] sm:$0x1]
        %v373 = vperm.slane %v372, 0
        %v390 = vunpack.c.l.b16 %v355
        %v391 = vunpack.c.l.b16 %v356
        %v392 = vunpack.c.l.b16 %v357
        %v393 = vunpack.c.l.b16 %v358
        %v394 = vunpack.c.l.b16 %v359
        %v395 = vunpack.c.l.b16 %v360
        %v396 = vunpack.c.l.b16 %v361
        %v397 = vunpack.c.l.b16 %v362
        %v398 = vunpack.c.l.b16 %v363
        %v399 = vunpack.c.l.b16 %v364
        %v400 = vunpack.c.l.b16 %v365
        %v401 = vunpack.c.l.b16 %v366
        %v402 = vunpack.c.l.b16 %v367
        %v403 = vunpack.c.l.b16 %v368
        %v404 = vunpack.c.l.b16 %v369
        %v405 = vunpack.c.l.b16 %v370
        %v406 = vpack.c.b16 %v391, %v390
        %v407 = vpack.c.b16 %v393, %v392
        %v408 = vpack.c.b16 %v395, %v394
        %v409 = vpack.c.b16 %v397, %v396
        %v410 = vpack.c.b16 %v399, %v398
        %v411 = vpack.c.b16 %v401, %v400
        %v412 = vpack.c.b16 %v403, %v402
        %v413 = vpack.c.b16 %v405, %v404
        %422 = vmatpush.bf16.msra.mxu0 %v413
        %423 = vmatpush.bf16.msra.mxu0 %v412
        %424 = vmatpush.bf16.msra.mxu0 %v411
        %425 = vmatpush.bf16.msra.mxu0 %v410
        %426 = vmatpush.bf16.msra.mxu0 %v409
        %427 = vmatpush.bf16.msra.mxu0 %v408
        %428 = vmatpush.bf16.msra.mxu0 %v407
        %429 = vmatpush.bf16.msra.mxu0 %v406
        %430 = vmatmul.bf16.gmra.mxu0 %v371
        %v431 = vpop.f32.mrf.mxu0
        %v432 = vadd.f32 %v373, %v431
        %v433 = vpop.f32.mrf.mxu0
        %v434 = vadd.f32 %v373, %v433
        %435 = vdwg.mxu0
        %436 = vadd.xlane.f32.xlu0 %v432
        %v437 = vpop.xlane.xlu0 %436
        %438 = vadd.xlane.f32.xlu0 %v434
        %v439 = vpop.xlane.xlu0 %438
        %v440 = vmul.f32 %v437, 0.03125
        %v441 = vmul.f32 %v439, 0.03125
        %v442 = vmul.f32 %v432, %v432
        %v443 = vmul.f32 %v434, %v434
        %444 = vadd.xlane.f32.xlu0 %v442
        %v445 = vpop.xlane.xlu0 %444
        %446 = vadd.xlane.f32.xlu0 %v443
        %v447 = vpop.xlane.xlu0 %446
        %v448 = vmul.f32 %v445, 0.03125
        %v449 = vmul.f32 %v447, 0.03125
        %v450 = vmul.f32 %v440, %v440
        %v451 = vmul.f32 %v441, %v441
        %v452 = vsub.f32 %v448, %v450
        %v453 = vsub.f32 %v449, %v451
        %v454 = vmax.f32 %v452, 0.0
        %v455 = vmax.f32 %v453, 0.0
        %v456 = vsub.f32 %v432, %v440
        %v457 = vsub.f32 %v434, %v441
        %v458 = vadd.f32 %v454, 1e-05
        %v459 = vadd.f32 %v455, 1e-05
        %v460 = vrsqrt.pop %v458
        %v461 = vmul.f32 %v460, %v458
        %v462 = vmul.f32 %v461, %v460
        %v463 = vmul.f32 0.5, %v462
        %v464 = vsub.f32 1.5, %v463
        %v465 = vmul.f32 %v460, %v464
        %vm466 = vweird.f32 %v458
        %vm467 = vweird.f32 %v460
        %vm468 = vmor %vm466, %vm467
        %v469 = vsel %vm468, %v460, %v465
        %v470 = vrsqrt.pop %v459
        %v471 = vmul.f32 %v470, %v459
        %v472 = vmul.f32 %v471, %v470
        %v473 = vmul.f32 0.5, %v472
        %v474 = vsub.f32 1.5, %v473
        %v475 = vmul.f32 %v470, %v474
        %vm476 = vweird.f32 %v459
        %vm477 = vweird.f32 %v470
        %vm478 = vmor %vm476, %vm477
        %v479 = vsel %vm478, %v470, %v475
        %v480 = vmul.f32 %v456, %v469
        %v481 = vmul.f32 %v457, %v479
        %v482 = vld [vmem:[%s338 + $0x1] sm:$0x1]
        %v483 = vperm.slane %v482, 0
        %v484 = vmul.f32 %v480, %v483
        %v485 = vmul.f32 %v481, %v483
        %v486 = vld [vmem:[%s338 + $0x2] sm:$0x1]
        %v487 = vperm.slane %v486, 0
        %v488 = vadd.f32 %v484, %v487
        %v489 = vadd.f32 %v485, %v487
        %v490 = vmax.f32 %v488, 0.0
        %v491 = vmax.f32 %v489, 0.0
        %492 = vst [vmem:[#allocation2] sm:$0xff] %v490
        %493 = vst [vmem:[#allocation2 + $0x8] sm:$0xff] %v491
        %p494 = scmp.eq.s32.totalorder %s26, 1
        // Predicated region
        $region57: #{tpu_custom_call.1} parent=39 // pred_check
          %p495 = pneg %p494
        $region58: #{tpu_custom_call.1} parent=39 // pred_check_branch
          %497 = sbr.rel (%p495) target = $region60
        $region59: #{tpu_custom_call.1} parent=39 // pred_region
          %v498 = vld [vmem:[#allocation8] sm:$0xf]
          %v499 = vld [vmem:[#allocation8 + $0x4] sm:$0xf]
          %v500 = vld [vmem:[#allocation8 + $0x8] sm:$0xf]
          %v501 = vld [vmem:[#allocation8 + $0xc] sm:$0xf]
          %v502 = vld [vmem:[#allocation8 + $0x10] sm:$0xf]
          %v503 = vld [vmem:[#allocation8 + $0x14] sm:$0xf]
          %v504 = vld [vmem:[#allocation8 + $0x18] sm:$0xf]
          %v505 = vld [vmem:[#allocation8 + $0x1c] sm:$0xf]
          %v506 = vld [vmem:[#allocation8 + $0x20] sm:$0xf]
          %v507 = vld [vmem:[#allocation8 + $0x24] sm:$0xf]
          %v508 = vld [vmem:[#allocation8 + $0x28] sm:$0xf]
          %v509 = vld [vmem:[#allocation8 + $0x2c] sm:$0xf]
          %v510 = vld [vmem:[#allocation8 + $0x30] sm:$0xf]
          %v511 = vld [vmem:[#allocation8 + $0x34] sm:$0xf]
          %v512 = vld [vmem:[#allocation8 + $0x38] sm:$0xf]
          %v513 = vld [vmem:[#allocation8 + $0x3c] sm:$0xf]
          %v514 = vpack.c.bf16 %v491, %v490
          %v515 = vld [vmem:[%s343] sm:$0x1]
          %v517 = vperm.slane %v515, 0
          %v535 = vunpack.c.l.b16 %v498
          %v536 = vunpack.c.l.b16 %v499
          %v537 = vunpack.c.l.b16 %v500
          %v538 = vunpack.c.l.b16 %v501
          %v539 = vunpack.c.l.b16 %v502
          %v540 = vunpack.c.l.b16 %v503
          %v541 = vunpack.c.l.b16 %v504
          %v542 = vunpack.c.l.b16 %v505
          %v543 = vunpack.c.l.b16 %v506
          %v544 = vunpack.c.l.b16 %v507
          %v545 = vunpack.c.l.b16 %v508
          %v546 = vunpack.c.l.b16 %v509
          %v547 = vunpack.c.l.b16 %v510
          %v548 = vunpack.c.l.b16 %v511
          %v549 = vunpack.c.l.b16 %v512
          %v550 = vunpack.c.l.b16 %v513
          %v551 = vpack.c.b16 %v536, %v535
          %v552 = vpack.c.b16 %v538, %v537
          %v553 = vpack.c.b16 %v540, %v539
          %v554 = vpack.c.b16 %v542, %v541
          %v555 = vpack.c.b16 %v544, %v543
          %v556 = vpack.c.b16 %v546, %v545
          %v557 = vpack.c.b16 %v548, %v547
          %v558 = vpack.c.b16 %v550, %v549
          %567 = vmatpush.bf16.msra.mxu0 %v558
          %568 = vmatpush.bf16.msra.mxu0 %v557
          %569 = vmatpush.bf16.msra.mxu0 %v556
          %570 = vmatpush.bf16.msra.mxu0 %v555
          %571 = vmatpush.bf16.msra.mxu0 %v554
          %572 = vmatpush.bf16.msra.mxu0 %v553
          %573 = vmatpush.bf16.msra.mxu0 %v552
          %574 = vmatpush.bf16.msra.mxu0 %v551
          %575 = vmatmul.bf16.gmra.mxu0 %v514
          %v576 = vpop.f32.mrf.mxu0
          %v577 = vadd.f32 %v517, %v576
          %v578 = vpop.f32.mrf.mxu0
          %v579 = vadd.f32 %v517, %v578
          %580 = vdwg.mxu0
          %581 = vst [vmem:[#allocation9] sm:$0xff] %v577
          %582 = vst [vmem:[#allocation9 + $0x8] sm:$0xff] %v579
        $region60: #{tpu_custom_call.1} parent=39 // pred_fallthru
          _
        // Predicated region
        $region61: #{tpu_custom_call.1} parent=39 // pred_check
          %p583 = pneg %p184
        $region62: #{tpu_custom_call.1} parent=39 // pred_check_branch
          %585 = sbr.rel (%p583) target = $region64
        $region63: #{tpu_custom_call.1} parent=39 // pred_region
          %s586 = smul.u32 2, %s25
          %588 = vsyncadd [#allocation5], 0
          %s589 = smul.addr %s586, 8
          %s590 = scalar_lea.hbm %s5, %s589
          %s591 = sshll.u32 [#allocation9], 4
          %s592 = int_to_ptr.vmem [resolvable:$true] %s591
          %s593 = sshll.u32 %s590, 4
          %s594 = int_to_ptr.hbm [resolvable:$true] %s593
          %599 = dma.vmem_to_hbm [thread:$0]  %s592, 256, %s594, [#allocation5], 128, 128, 8
        $region64: #{tpu_custom_call.1} parent=39 // pred_fallthru
          _
        // Predicated region
        $region65: #{tpu_custom_call.1} parent=39 // pred_check
          %p600 = pneg %p184
        $region66: #{tpu_custom_call.1} parent=39 // pred_check_branch
          %602 = sbr.rel (%p600) target = $region68
        $region67: #{tpu_custom_call.1} parent=39 // pred_region
          %604 = dma.done [#allocation5], 256
        $region68: #{tpu_custom_call.1} parent=39 // pred_fallthru
          _
      $region40: #{tpu_custom_call.1} parent=5 // pred_fallthru
        _
      %p605 = scmp.le.s32.totalorder 2, %s16
      // Predicated region
      $region69: #{tpu_custom_call.1} parent=5 // pred_check
        %p606 = pneg %p605
      $region70: #{tpu_custom_call.1} parent=5 // pred_check_branch
        %608 = sbr.rel (%p606) target = $region72
      $region71: #{tpu_custom_call.1} parent=5 // pred_region
        %s609 = ssub.s32 %s16, 2
      $region72: #{tpu_custom_call.1} parent=5 // pred_fallthru
        _
    $region6: #{tpu_custom_call.1} parent=1 // loop_footer
      %s20 = sadd.s32 1, %s16
    $region7: #{tpu_custom_call.1} parent=1 // loop_footer_branch
      %15 = sbr.rel target = $region3
    $region8: #{tpu_custom_call.1} parent=1 // loop_exit
      _
    %610 = vsyncpa [#allocation4], 1
    %s611 = scalar_lea.sflag [#allocation4], 1
    %612 = vsyncpa %s611, 1
    %613 = vsyncpa [#allocation7], 1
    %s614 = scalar_lea.sflag [#allocation7], 1
    %615 = vsyncpa %s614, 1
    %616 = vsyncpa [#allocation5], 1
    %s617 = scalar_lea.sflag [#allocation5], 1
    %618 = vsyncpa %s617, 1

</llo_original>
